<compile_context>
chip_gen: v5e
topology: v5e:2x2
jax: 0.10.0
libtpu: 0.0.40
codegen_flags: <defaults>
</compile_context>

<pallas_src>
import math

import jax
import jax.numpy as jnp
from jax.experimental import pallas as pl
from jax.experimental.pallas import tpu as pltpu

# --- small Llama-like config ---
B = 2              # batch
S = 8              # seq len
H = 32             # hidden_size
NH = 4             # num_attention_heads
NKV = 2            # num_key_value_heads
HD = H // NH       # head_dim = 8
NREP = NH // NKV   # GQA group size
ROPE_THETA = 10000.0

NSLOT = NH + 2 * NKV          # q + k + v head slots = 8
SCALE = 1.0 / math.sqrt(HD)
NEG_MASK = -1e30              # large finite: avoids -inf intermediates; causal rows
                              # are never fully masked, so softmax matches reference.

# TODO(synk): at production sizes set this to jnp.bfloat16 (v6e/v7x MXUs are
# bf16-native; halves weight/activation DMA). Softmax, RoPE and accumulation stay
# f32 below regardless of this setting.
MXU_DTYPE = jnp.float32


def llama_attention_kernel(hs_ref, wqkv_ref, wo_ref, cos_ref, sin_ref, rotm_ref,
                           out_ref):
    f32 = jnp.float32
    x = hs_ref[0]                                                  # (S, H)

    # Fused QKV projection, batched over head slots (head-leading result, so no
    # in-kernel transposes are needed downstream).
    xb = jnp.broadcast_to(x, (NSLOT, S, H)).astype(MXU_DTYPE)
    wqkv = wqkv_ref[...].astype(MXU_DTYPE)
    qkv = jnp.einsum('nsh,nhd->nsd', xb, wqkv,
                     preferred_element_type=f32)                   # (NSLOT, S, HD)

    # ---- RoPE on the q and k slots (f32) ----------------------------------------
    nqk = NH + NKV
    qk = qkv[:nqk].reshape(nqk * S, HD)                            # (48, HD)
    # rotate_half via a tiny constant (HD, HD) permutation-with-sign matmul.
    # TODO(synk): at production HD (=128) use pltpu.roll(qk, HD//2, axis=-1) with
    # the sign folded into the sin table (XLU slot) instead of this MXU matmul.
    rot = jnp.dot(qk, rotm_ref[...], preferred_element_type=f32)   # (48, HD)
    cos = jnp.tile(cos_ref[...], (nqk, 1))                         # (48, HD) in-kernel broadcast
    sin = jnp.tile(sin_ref[...], (nqk, 1))
    qk = qk * cos + rot * sin

    # ---- split heads; GQA: fold each kv group's NREP query heads into rows -------
    qg = qk[:NH * S].reshape(NKV, NREP * S, HD)                    # (NKV, NREP*S, HD)
    kg = qk[NH * S:].reshape(NKV, S, HD)                           # (NKV, S, HD)
    vg = qkv[nqk:]                                                 # (NKV, S, HD)

    # ---- scores + causal mask + softmax (f32) ------------------------------------
    s = jnp.einsum('gqd,gkd->gqk', qg.astype(MXU_DTYPE), kg.astype(MXU_DTYPE),
                   preferred_element_type=f32) * SCALE             # (NKV, NREP*S, S)
    qpos = jax.lax.broadcasted_iota(jnp.int32, (NREP, S, S), 1).reshape(NREP * S, S)
    kpos = jax.lax.broadcasted_iota(jnp.int32, (NREP * S, S), 1)
    s = jnp.where(kpos <= qpos, s, NEG_MASK)
    s = s - jnp.max(s, axis=-1, keepdims=True)
    p = jnp.exp(s)
    p = p * pl.reciprocal(jnp.sum(p, axis=-1, keepdims=True), approx=True)
    # TODO(synk): attention_dropout (0.0 in this config) not implemented.

    # ---- PV and per-head output projection, reduced over heads in registers ------
    pv = jnp.einsum('gqk,gkd->gqd', p.astype(MXU_DTYPE), vg.astype(MXU_DTYPE),
                    preferred_element_type=f32)                    # (NKV, NREP*S, HD)
    pvh = pv.reshape(NH, S, HD)
    wo = wo_ref[...].astype(MXU_DTYPE)
    out = jnp.einsum('nsd,ndh->nsh', pvh.astype(MXU_DTYPE), wo,
                     preferred_element_type=f32)                   # (NH, S, H)
    out_ref[0] = jnp.sum(out, axis=0).astype(out_ref.dtype)        # one lane-dense (S,H) store


def llama_attention_pallas(hidden_states, wqkv3, wo3, cos, sin, rotm):
    # TODO(synk): at production S/H this one-block-per-batch layout must become a
    # flash-attention style grid (B*NH parallel, q-block parallel, kv-block
    # arbitrary) with m/l/acc scratch, generation-specific tile sizes (v7x roughly
    # half of v6e) and an explicit vmem_limit_bytes.
    return pl.pallas_call(
        llama_attention_kernel,
        out_shape=jax.ShapeDtypeStruct((B, S, H), jnp.float32),
        grid_spec=pltpu.PrefetchScalarGridSpec(
            num_scalar_prefetch=0,
            grid=(B,),  # one batch element per step
            in_specs=[
                pl.BlockSpec((1, S, H), lambda b: (b, 0, 0)),        # hidden_states
                pl.BlockSpec((NSLOT, H, HD), lambda b: (0, 0, 0)),   # fused QKV weight
                pl.BlockSpec((NH, HD, H), lambda b: (0, 0, 0)),      # per-head o_proj
                pl.BlockSpec((S, HD), lambda b: (0, 0)),             # cos (un-tiled)
                pl.BlockSpec((S, HD), lambda b: (0, 0)),             # sin (un-tiled)
                pl.BlockSpec((HD, HD), lambda b: (0, 0)),            # rotate_half matrix
            ],
            out_specs=pl.BlockSpec((1, S, H), lambda b: (b, 0, 0)),
        ),
        compiler_params=pltpu.CompilerParams(
            dimension_semantics=("parallel",)),   # v7x: shard batch across 2 TCs
    )(hidden_states, wqkv3, wo3, cos, sin, rotm)


# ---------------- host-side weight / table preparation ----------------
def prepare_weights(wq, wk, wv, wo):
    """PyTorch Linear weights are (out, in); build head-leading kernel layouts."""
    wq3 = wq.reshape(NH, HD, H).transpose(0, 2, 1)     # (NH, H, HD)
    wk3 = wk.reshape(NKV, HD, H).transpose(0, 2, 1)    # (NKV, H, HD)
    wv3 = wv.reshape(NKV, HD, H).transpose(0, 2, 1)    # (NKV, H, HD)
    wqkv3 = jnp.concatenate([wq3, wk3, wv3], axis=0)   # (NSLOT, H, HD) standard width
    wo3 = wo.T.reshape(NH, HD, H)                      # per-head o_proj blocks
    return wqkv3, wo3


def make_rotate_half_matrix():
    """Constant (HD, HD) matrix R with x @ R == rotate_half(x)."""
    half = HD // 2
    eye = jnp.eye(half, dtype=jnp.float32)
    z = jnp.zeros((half, half), dtype=jnp.float32)
    top = jnp.concatenate([z, eye], axis=1)     # rows i <  half: +1 at col i+half
    bot = jnp.concatenate([-eye, z], axis=1)    # rows i >= half: -1 at col i-half
    return jnp.concatenate([top, bot], axis=0)


# ---------------- plain-JAX reference (mirrors the PyTorch forward) ----------------
def _rotate_half(x):
    d = x.shape[-1]
    return jnp.concatenate([-x[..., d // 2:], x[..., : d // 2]], axis=-1)


def reference_forward(hidden_states, wq, wk, wv, wo, cos, sin, attn_mask):
    bsz, q_len, _ = hidden_states.shape
    q = hidden_states @ wq.T
    k = hidden_states @ wk.T
    v = hidden_states @ wv.T
    q = q.reshape(bsz, q_len, NH, HD).transpose(0, 2, 1, 3)
    k = k.reshape(bsz, q_len, NKV, HD).transpose(0, 2, 1, 3)
    v = v.reshape(bsz, q_len, NKV, HD).transpose(0, 2, 1, 3)
    c = cos[None, None]
    s = sin[None, None]
    q = q * c + _rotate_half(q) * s
    k = k * c + _rotate_half(k) * s
    k = jnp.repeat(k, NREP, axis=1)
    v = jnp.repeat(v, NREP, axis=1)
    scores = jnp.einsum("bhqd,bhkd->bhqk", q, k) / math.sqrt(HD) + attn_mask
    probs = jax.nn.softmax(scores.astype(jnp.float32), axis=-1)
    out = jnp.einsum("bhqk,bhkd->bhqd", probs, v)
    out = out.transpose(0, 2, 1, 3).reshape(bsz, q_len, H)
    return out @ wo.T


if __name__ == "__main__":
    key = jax.random.PRNGKey(0)
    k_hs, k_q, k_k, k_v, k_o = jax.random.split(key, 5)

    hidden_states = jax.random.normal(k_hs, (B, S, H), dtype=jnp.float32)

    # PyTorch nn.Linear weight layout: (out_features, in_features), no bias.
    wq = jax.random.normal(k_q, (NH * HD, H), dtype=jnp.float32) * 0.05
    wk = jax.random.normal(k_k, (NKV * HD, H), dtype=jnp.float32) * 0.05
    wv = jax.random.normal(k_v, (NKV * HD, H), dtype=jnp.float32) * 0.05
    wo = jax.random.normal(k_o, (H, NH * HD), dtype=jnp.float32) * 0.05

    # LlamaRotaryEmbedding (positions 0..S-1)
    inv_freq = 1.0 / (ROPE_THETA ** (jnp.arange(0, HD, 2, dtype=jnp.float32) / HD))
    pos = jnp.arange(S, dtype=jnp.float32)
    freqs = jnp.outer(pos, inv_freq)                 # (S, HD/2)
    emb = jnp.concatenate([freqs, freqs], axis=-1)   # (S, HD)
    cos = jnp.cos(emb)
    sin = jnp.sin(emb)

    # additive causal attention mask (reference only; kernel builds it via iota)
    neg = jnp.finfo(jnp.float32).min
    causal = jnp.where(jnp.tril(jnp.ones((S, S), dtype=bool)), 0.0, neg)
    attn_mask = jnp.broadcast_to(causal[None, None], (B, 1, S, S)).astype(jnp.float32)

    wqkv3, wo3 = prepare_weights(wq, wk, wv, wo)
    rotm = make_rotate_half_matrix()

    out = llama_attention_pallas(hidden_states, wqkv3, wo3, cos, sin, rotm)
    out = jax.block_until_ready(out)

    ref = reference_forward(hidden_states, wq, wk, wv, wo, cos, sin, attn_mask)
    err = jnp.max(jnp.abs(out - ref))
    assert jnp.allclose(out, ref, rtol=1e-3, atol=1e-3), f"mismatch vs reference (max abs err {err})"

    print("KERNEL_OK")
</pallas_src>

<mosaic_0001>
module attributes {stable_mosaic.version = 11 : i64} {
  func.func @llama_attention_kernel(%arg0: i32, %arg1: memref<1x8x32xf32, #tpu.memory_space<vmem>>, %arg2: memref<8x32x8xf32, #tpu.memory_space<vmem>>, %arg3: memref<4x8x32xf32, #tpu.memory_space<vmem>>, %arg4: memref<8x8xf32, #tpu.memory_space<vmem>>, %arg5: memref<8x8xf32, #tpu.memory_space<vmem>>, %arg6: memref<8x8xf32, #tpu.memory_space<vmem>>, %arg7: memref<1x8x32xf32, #tpu.memory_space<vmem>>) attributes {dimension_semantics = [#tpu.dimension_semantics<parallel>], iteration_bounds = array<i64: 2>, scalar_prefetch = 0 : i64, scratch_operands = 0 : i64, tpu.core_type = #tpu.core_type<tc>, window_params = [{transform_indices = @transform_0, window_bounds = array<i64: 1, 8, 32>}, {pipeline_mode = #tpu.pipeline_mode<synchronous>, transform_indices = @transform_1, window_bounds = array<i64: 8, 32, 8>}, {pipeline_mode = #tpu.pipeline_mode<synchronous>, transform_indices = @transform_2, window_bounds = array<i64: 4, 8, 32>}, {pipeline_mode = #tpu.pipeline_mode<synchronous>, transform_indices = @transform_3, window_bounds = array<i64: 8, 8>}, {pipeline_mode = #tpu.pipeline_mode<synchronous>, transform_indices = @transform_4, window_bounds = array<i64: 8, 8>}, {pipeline_mode = #tpu.pipeline_mode<synchronous>, transform_indices = @transform_5, window_bounds = array<i64: 8, 8>}, {transform_indices = @transform_6, window_bounds = array<i64: 1, 8, 32>}]} {
    %c0 = arith.constant 0 : index
    %c0_0 = arith.constant 0 : index
    %c0_1 = arith.constant 0 : index
    %0 = vector.load %arg1[%c0, %c0_0, %c0_1] : memref<1x8x32xf32, #tpu.memory_space<vmem>>, vector<1x8x32xf32>
    %1 = vector.shape_cast %0 : vector<1x8x32xf32> to vector<8x32xf32>
    %2 = vector.shape_cast %1 : vector<8x32xf32> to vector<1x8x32xf32>
    %3 = vector.broadcast %2 : vector<1x8x32xf32> to vector<8x8x32xf32>
    %c0_2 = arith.constant 0 : index
    %c0_3 = arith.constant 0 : index
    %c0_4 = arith.constant 0 : index
    %4 = vector.load %arg2[%c0_2, %c0_3, %c0_4] : memref<8x32x8xf32, #tpu.memory_space<vmem>>, vector<8x32x8xf32>
    "tpu.trace_start"() <{level = 10 : i32, message = "nsh,nhd->nsd"}> : () -> ()
    %cst = arith.constant dense<0.000000e+00> : vector<8x8x8xf32>
    %5 = tpu.matmul %3, %4, %cst {dimension_numbers = #tpu.dot_dimension_numbers<[2], [1], [1], [2], [0, 0, 0, 1, 1, 2], [0], [0]>} : vector<8x8x32xf32>, vector<8x32x8xf32>, vector<8x8x8xf32> -> vector<8x8x8xf32>
    "tpu.trace_stop"() : () -> ()
    %6 = vector.extract_strided_slice %5 {offsets = [0, 0, 0], sizes = [6, 8, 8], strides = [1, 1, 1]} : vector<8x8x8xf32> to vector<6x8x8xf32>
    %7 = vector.shape_cast %6 : vector<6x8x8xf32> to vector<48x8xf32>
    %c0_5 = arith.constant 0 : index
    %c0_6 = arith.constant 0 : index
    %8 = vector.load %arg6[%c0_5, %c0_6] : memref<8x8xf32, #tpu.memory_space<vmem>>, vector<8x8xf32>
    %cst_7 = arith.constant dense<0.000000e+00> : vector<48x8xf32>
    %9 = tpu.matmul %7, %8, %cst_7 {dimension_numbers = #tpu.dot_dimension_numbers<[1], [0], [0], [1], [0, 0, 1, 1], [], []>} : vector<48x8xf32>, vector<8x8xf32>, vector<48x8xf32> -> vector<48x8xf32>
    %c0_8 = arith.constant 0 : index
    %c0_9 = arith.constant 0 : index
    %10 = vector.load %arg4[%c0_8, %c0_9] : memref<8x8xf32, #tpu.memory_space<vmem>>, vector<8x8xf32>
    %11 = tpu.concatenate %10, %10, %10, %10, %10, %10 in 0 : vector<8x8xf32>, vector<8x8xf32>, vector<8x8xf32>, vector<8x8xf32>, vector<8x8xf32>, vector<8x8xf32> -> vector<48x8xf32>
    %c0_10 = arith.constant 0 : index
    %c0_11 = arith.constant 0 : index
    %12 = vector.load %arg5[%c0_10, %c0_11] : memref<8x8xf32, #tpu.memory_space<vmem>>, vector<8x8xf32>
    %13 = tpu.concatenate %12, %12, %12, %12, %12, %12 in 0 : vector<8x8xf32>, vector<8x8xf32>, vector<8x8xf32>, vector<8x8xf32>, vector<8x8xf32>, vector<8x8xf32> -> vector<48x8xf32>
    %14 = arith.mulf %7, %11 : vector<48x8xf32>
    %15 = arith.mulf %9, %13 : vector<48x8xf32>
    %16 = arith.addf %14, %15 : vector<48x8xf32>
    %17 = vector.extract_strided_slice %16 {offsets = [0, 0], sizes = [32, 8], strides = [1, 1]} : vector<48x8xf32> to vector<32x8xf32>
    %18 = vector.shape_cast %17 : vector<32x8xf32> to vector<2x16x8xf32>
    %19 = vector.extract_strided_slice %16 {offsets = [32, 0], sizes = [16, 8], strides = [1, 1]} : vector<48x8xf32> to vector<16x8xf32>
    %20 = vector.shape_cast %19 : vector<16x8xf32> to vector<2x8x8xf32>
    %21 = vector.extract_strided_slice %5 {offsets = [6, 0, 0], sizes = [2, 8, 8], strides = [1, 1, 1]} : vector<8x8x8xf32> to vector<2x8x8xf32>
    "tpu.trace_start"() <{level = 10 : i32, message = "gqd,gkd->gqk"}> : () -> ()
    %cst_12 = arith.constant dense<0.000000e+00> : vector<2x16x8xf32>
    %22 = tpu.matmul %18, %20, %cst_12 {dimension_numbers = #tpu.dot_dimension_numbers<[2], [2], [1], [1], [0, 0, 0, 1, 1, 1], [0], [0]>} : vector<2x16x8xf32>, vector<2x8x8xf32>, vector<2x16x8xf32> -> vector<2x16x8xf32>
    "tpu.trace_stop"() : () -> ()
    %cst_13 = arith.constant 0.353553385 : f32
    %23 = vector.broadcast %cst_13 : f32 to vector<2x16x8xf32>
    %24 = arith.mulf %22, %23 : vector<2x16x8xf32>
    %25 = tpu.iota {dimensions = array<i32: 1>} : vector<2x8x8xi32>
    %26 = vector.shape_cast %25 : vector<2x8x8xi32> to vector<16x8xi32>
    %27 = tpu.iota {dimensions = array<i32: 1>} : vector<16x8xi32>
    %28 = arith.cmpi sle, %27, %26 : vector<16x8xi32>
    %cst_14 = arith.constant -1.000000e+30 : f32
    %29 = vector.shape_cast %28 : vector<16x8xi1> to vector<1x16x8xi1>
    %30 = vector.broadcast %29 : vector<1x16x8xi1> to vector<2x16x8xi1>
    %31 = vector.broadcast %cst_14 : f32 to vector<2x16x8xf32>
    %32 = arith.select %30, %24, %31 : vector<2x16x8xi1>, vector<2x16x8xf32>
    %cst_15 = arith.constant dense<0xFF800000> : vector<2x16xf32>
    %33 = vector.multi_reduction <maximumf>, %32, %cst_15 [2] : vector<2x16x8xf32> to vector<2x16xf32>
    %34 = vector.shape_cast %33 : vector<2x16xf32> to vector<2x16x1xf32>
    %35 = vector.broadcast %34 : vector<2x16x1xf32> to vector<2x16x8xf32>
    %36 = arith.subf %32, %35 : vector<2x16x8xf32>
    %37 = math.exp %36 : vector<2x16x8xf32>
    %cst_16 = arith.constant dense<0.000000e+00> : vector<2x16xf32>
    %38 = vector.multi_reduction <add>, %37, %cst_16 [2] : vector<2x16x8xf32> to vector<2x16xf32>
    %39 = vector.shape_cast %38 : vector<2x16xf32> to vector<2x16x1xf32>
    %40 = tpu.reciprocal %39 {approx = true} : vector<2x16x1xf32> -> vector<2x16x1xf32>
    %41 = vector.broadcast %40 : vector<2x16x1xf32> to vector<2x16x8xf32>
    %42 = arith.mulf %37, %41 : vector<2x16x8xf32>
    "tpu.trace_start"() <{level = 10 : i32, message = "gqk,gkd->gqd"}> : () -> ()
    %cst_17 = arith.constant dense<0.000000e+00> : vector<2x16x8xf32>
    %43 = tpu.matmul %42, %21, %cst_17 {dimension_numbers = #tpu.dot_dimension_numbers<[2], [1], [1], [2], [0, 0, 0, 1, 1, 2], [0], [0]>} : vector<2x16x8xf32>, vector<2x8x8xf32>, vector<2x16x8xf32> -> vector<2x16x8xf32>
    "tpu.trace_stop"() : () -> ()
    %44 = vector.shape_cast %43 : vector<2x16x8xf32> to vector<4x8x8xf32>
    %c0_18 = arith.constant 0 : index
    %c0_19 = arith.constant 0 : index
    %c0_20 = arith.constant 0 : index
    %45 = vector.load %arg3[%c0_18, %c0_19, %c0_20] : memref<4x8x32xf32, #tpu.memory_space<vmem>>, vector<4x8x32xf32>
    "tpu.trace_start"() <{level = 10 : i32, message = "nsd,ndh->nsh"}> : () -> ()
    %cst_21 = arith.constant dense<0.000000e+00> : vector<4x8x32xf32>
    %46 = tpu.matmul %44, %45, %cst_21 {dimension_numbers = #tpu.dot_dimension_numbers<[2], [1], [1], [2], [0, 0, 0, 1, 1, 2], [0], [0]>} : vector<4x8x8xf32>, vector<4x8x32xf32>, vector<4x8x32xf32> -> vector<4x8x32xf32>
    "tpu.trace_stop"() : () -> ()
    %cst_22 = arith.constant dense<0.000000e+00> : vector<8x32xf32>
    %47 = vector.multi_reduction <add>, %46, %cst_22 [0] : vector<4x8x32xf32> to vector<8x32xf32>
    %c0_23 = arith.constant 0 : index
    %c0_24 = arith.constant 0 : index
    %c0_25 = arith.constant 0 : index
    %48 = vector.load %arg7[%c0_23, %c0_24, %c0_25] : memref<1x8x32xf32, #tpu.memory_space<vmem>>, vector<1x8x32xf32>
    %49 = vector.shape_cast %48 : vector<1x8x32xf32> to vector<8x32xf32>
    %50 = vector.shape_cast %47 : vector<8x32xf32> to vector<1x8x32xf32>
    tpu.vector_store %arg7[%c0_23, %c0_24, %c0_25], %50 {strides = array<i32>} : memref<1x8x32xf32, #tpu.memory_space<vmem>>, vector<1x8x32xf32>,
    return
  }
  func.func @transform_0(%arg0: i32) -> (i32, i32, i32) {
    %c0_i32 = arith.constant 0 : i32
    %c0_i32_0 = arith.constant 0 : i32
    %c0_i32_1 = arith.constant 0 : i32
    return %arg0, %c0_i32, %c0_i32_0 : i32, i32, i32
  }
  func.func @transform_1(%arg0: i32) -> (i32, i32, i32) {
    %c0_i32 = arith.constant 0 : i32
    %c0_i32_0 = arith.constant 0 : i32
    %c0_i32_1 = arith.constant 0 : i32
    %c0_i32_2 = arith.constant 0 : i32
    return %c0_i32, %c0_i32_0, %c0_i32_1 : i32, i32, i32
  }
  func.func @transform_2(%arg0: i32) -> (i32, i32, i32) {
    %c0_i32 = arith.constant 0 : i32
    %c0_i32_0 = arith.constant 0 : i32
    %c0_i32_1 = arith.constant 0 : i32
    %c0_i32_2 = arith.constant 0 : i32
    return %c0_i32, %c0_i32_0, %c0_i32_1 : i32, i32, i32
  }
  func.func @transform_3(%arg0: i32) -> (i32, i32) {
    %c0_i32 = arith.constant 0 : i32
    %c0_i32_0 = arith.constant 0 : i32
    %c0_i32_1 = arith.constant 0 : i32
    return %c0_i32, %c0_i32_0 : i32, i32
  }
  func.func @transform_4(%arg0: i32) -> (i32, i32) {
    %c0_i32 = arith.constant 0 : i32
    %c0_i32_0 = arith.constant 0 : i32
    %c0_i32_1 = arith.constant 0 : i32
    return %c0_i32, %c0_i32_0 : i32, i32
  }
  func.func @transform_5(%arg0: i32) -> (i32, i32) {
    %c0_i32 = arith.constant 0 : i32
    %c0_i32_0 = arith.constant 0 : i32
    %c0_i32_1 = arith.constant 0 : i32
    return %c0_i32, %c0_i32_0 : i32, i32
  }
  func.func @transform_6(%arg0: i32) -> (i32, i32, i32) {
    %c0_i32 = arith.constant 0 : i32
    %c0_i32_0 = arith.constant 0 : i32
    %c0_i32_1 = arith.constant 0 : i32
    return %arg0, %c0_i32, %c0_i32_0 : i32, i32, i32
  }
}

</mosaic_0001>

<llo_original>
// kernel: tpu_custom_call.1
$region0: #{tpu_custom_call.1}
  #allocation0 [shape = 'u32[]', space=smem, size = 0x4, offset = 0x4, fixed_abs, tag = 'smem constant byte address 0x4 - core index']
  #allocation1 [shape = 'u32[72,128]{1,0:T(1,128)}', space=vmem, size = 0x9000, scoped, tag = 'internal scratch']
  %s0 = inlined_call_operand.vmem [shape: f32[2,8,32], index: 0, kind: input, shape index: {}]
  %s1 = inlined_call_operand.vmem [shape: f32[8,32,8], index: 1, kind: input, shape index: {}]
  %s2 = inlined_call_operand.vmem [shape: f32[4,8,32], index: 2, kind: input, shape index: {}]
  %s3 = inlined_call_operand.vmem [shape: f32[8,8], index: 3, kind: input, shape index: {}]
  %s4 = inlined_call_operand.vmem [shape: f32[8,8], index: 4, kind: input, shape index: {}]
  %s5 = inlined_call_operand.vmem [shape: f32[8,8], index: 5, kind: input, shape index: {}]
  %s6 = inlined_call_operand.hbm [shape: f32[2,8,32], index: 6, kind: output, shape index: {}]
  %s7 = sld [smem:[#allocation0]]
  $region57: #{tpu_custom_call.1} parent=0
    _
  %s9 = ssub.s32 1, %s7
  %s10 = scalar_select 0, %s9, %s7
  $region1: #{tpu_custom_call.1} parent=0
    #allocation2 [shape = 'u8[8192]{0}', space=vmem, size = 0x2000, scoped, tag = 'output window, operand 0']
    #allocation3 [shape = 's32[2]{0}', space=sflag, size = 0x8, scoped, tag = 'scoped memory for tpu_custom_call.1']
    %11 = vsyncpa [#allocation3], 0
    %s12 = scalar_lea.sflag [#allocation3], 1
    %13 = vsyncpa %s12, 0
    loop: start=0, step=1, limit=4
    $region2: #{tpu_custom_call.1} parent=1 // loop_pre_header
      _
    $region3: #{tpu_custom_call.1} parent=1 // loop_header
      %s15 = sphi 0, %s19
      %p16 = scmp.ge.s32.totalorder %s15, 4
      %s25 = sphi 0, %s27
      %s28 = sphi 0, %s25
      %s29 = sphi 0, %s28
      %s45 = sphi 0, %s29
      %s49 = sphi 0, %s49
      %s51 = sphi 0, %s49
      %s52 = sphi 0, %s51
      %s66 = sphi 0, %s52
      %s70 = sphi 0, %s70
      %s72 = sphi 0, %s70
      %s73 = sphi 0, %s72
      %s87 = sphi 0, %s73
      %s91 = sphi 0, %s91
      %s93 = sphi 0, %s91
      %s94 = sphi 0, %s93
      %s108 = sphi 0, %s94
      %s112 = sphi 0, %s112
      %s114 = sphi 0, %s112
      %s115 = sphi 0, %s114
      %s129 = sphi 0, %s115
      %s133 = sphi 0, %s133
      %s135 = sphi 0, %s133
      %s136 = sphi 0, %s135
      %s150 = sphi 0, %s136
      %s156 = sphi 0, %s158
      %s159 = sphi 0, %s156
      %s160 = sphi 0, %s159
      %s176 = sphi 0, %s160
    $region4: #{tpu_custom_call.1} parent=1 // loop_header_branch
      %18 = sbr.rel (%p16) target = $region8
    $region5: #{tpu_custom_call.1} parent=1 // loop_body
      %s20 = ssub.s32 %s15, 1
      %s21 = ssub.s32 %s15, 2
      %s22 = sadd.s32 %s15, 1
      %s23 = ssub.s32 %s15, %s22
      %p24 = scmp.eq.s32.totalorder %s23, 0
      %s26 = sadd.s32 %s25, 1
      %s27 = scalar_select %p24, %s25, %s26
      %p30 = pneg %p24
      %p31 = scmp.eq.s32.totalorder %s15, 1
      %p32 = por %p30, %p31
      %p33 = scmp.ne.s32.totalorder %s25, %s28
      %p34 = scmp.eq.s32.totalorder %s15, 0
      %p35 = por %p33, %p34
      %p36 = scmp.ne.s32.totalorder %s25, %s28
      %p37 = scmp.eq.s32.totalorder %s20, 1
      %p38 = por %p36, %p37
      %p39 = scmp.ne.s32.totalorder %s28, %s29
      %p40 = scmp.eq.s32.totalorder %s20, 0
      %p41 = por %p39, %p40
      %p42 = scmp.ne.s32.totalorder %s28, %s29
      %p43 = scmp.eq.s32.totalorder %s21, 1
      %p44 = por %p42, %p43
      %p46 = scmp.ne.s32.totalorder %s29, %s45
      %p47 = scmp.eq.s32.totalorder %s21, 0
      %p48 = por %p46, %p47
      %s50 = sadd.s32 %s49, 1
      %p53 = scmp.eq.s32.totalorder %s15, 1
      %p54 = scmp.ne.s32.totalorder %s49, %s51
      %p55 = scmp.eq.s32.totalorder %s15, 0
      %p56 = por %p54, %p55
      %p57 = scmp.ne.s32.totalorder %s49, %s51
      %p58 = scmp.eq.s32.totalorder %s20, 1
      %p59 = por %p57, %p58
      %p60 = scmp.ne.s32.totalorder %s51, %s52
      %p61 = scmp.eq.s32.totalorder %s20, 0
      %p62 = por %p60, %p61
      %p63 = scmp.ne.s32.totalorder %s51, %s52
      %p64 = scmp.eq.s32.totalorder %s21, 1
      %p65 = por %p63, %p64
      %p67 = scmp.ne.s32.totalorder %s52, %s66
      %p68 = scmp.eq.s32.totalorder %s21, 0
      %p69 = por %p67, %p68
      %s71 = sadd.s32 %s70, 1
      %p74 = scmp.eq.s32.totalorder %s15, 1
      %p75 = scmp.ne.s32.totalorder %s70, %s72
      %p76 = scmp.eq.s32.totalorder %s15, 0
      %p77 = por %p75, %p76
      %p78 = scmp.ne.s32.totalorder %s70, %s72
      %p79 = scmp.eq.s32.totalorder %s20, 1
      %p80 = por %p78, %p79
      %p81 = scmp.ne.s32.totalorder %s72, %s73
      %p82 = scmp.eq.s32.totalorder %s20, 0
      %p83 = por %p81, %p82
      %p84 = scmp.ne.s32.totalorder %s72, %s73
      %p85 = scmp.eq.s32.totalorder %s21, 1
      %p86 = por %p84, %p85
      %p88 = scmp.ne.s32.totalorder %s73, %s87
      %p89 = scmp.eq.s32.totalorder %s21, 0
      %p90 = por %p88, %p89
      %s92 = sadd.s32 %s91, 1
      %p95 = scmp.eq.s32.totalorder %s15, 1
      %p96 = scmp.ne.s32.totalorder %s91, %s93
      %p97 = scmp.eq.s32.totalorder %s15, 0
      %p98 = por %p96, %p97
      %p99 = scmp.ne.s32.totalorder %s91, %s93
      %p100 = scmp.eq.s32.totalorder %s20, 1
      %p101 = por %p99, %p100
      %p102 = scmp.ne.s32.totalorder %s93, %s94
      %p103 = scmp.eq.s32.totalorder %s20, 0
      %p104 = por %p102, %p103
      %p105 = scmp.ne.s32.totalorder %s93, %s94
      %p106 = scmp.eq.s32.totalorder %s21, 1
      %p107 = por %p105, %p106
      %p109 = scmp.ne.s32.totalorder %s94, %s108
      %p110 = scmp.eq.s32.totalorder %s21, 0
      %p111 = por %p109, %p110
      %s113 = sadd.s32 %s112, 1
      %p116 = scmp.eq.s32.totalorder %s15, 1
      %p117 = scmp.ne.s32.totalorder %s112, %s114
      %p118 = scmp.eq.s32.totalorder %s15, 0
      %p119 = por %p117, %p118
      %p120 = scmp.ne.s32.totalorder %s112, %s114
      %p121 = scmp.eq.s32.totalorder %s20, 1
      %p122 = por %p120, %p121
      %p123 = scmp.ne.s32.totalorder %s114, %s115
      %p124 = scmp.eq.s32.totalorder %s20, 0
      %p125 = por %p123, %p124
      %p126 = scmp.ne.s32.totalorder %s114, %s115
      %p127 = scmp.eq.s32.totalorder %s21, 1
      %p128 = por %p126, %p127
      %p130 = scmp.ne.s32.totalorder %s115, %s129
      %p131 = scmp.eq.s32.totalorder %s21, 0
      %p132 = por %p130, %p131
      %s134 = sadd.s32 %s133, 1
      %p137 = scmp.eq.s32.totalorder %s15, 1
      %p138 = scmp.ne.s32.totalorder %s133, %s135
      %p139 = scmp.eq.s32.totalorder %s15, 0
      %p140 = por %p138, %p139
      %p141 = scmp.ne.s32.totalorder %s133, %s135
      %p142 = scmp.eq.s32.totalorder %s20, 1
      %p143 = por %p141, %p142
      %p144 = scmp.ne.s32.totalorder %s135, %s136
      %p145 = scmp.eq.s32.totalorder %s20, 0
      %p146 = por %p144, %p145
      %p147 = scmp.ne.s32.totalorder %s135, %s136
      %p148 = scmp.eq.s32.totalorder %s21, 1
      %p149 = por %p147, %p148
      %p151 = scmp.ne.s32.totalorder %s136, %s150
      %p152 = scmp.eq.s32.totalorder %s21, 0
      %p153 = por %p151, %p152
      %s154 = ssub.s32 %s15, %s22
      %p155 = scmp.eq.s32.totalorder %s154, 0
      %s157 = sadd.s32 %s156, 1
      %s158 = scalar_select %p155, %s156, %s157
      %p161 = pneg %p155
      %p162 = scmp.eq.s32.totalorder %s15, 1
      %p163 = por %p161, %p162
      %p164 = scmp.ne.s32.totalorder %s156, %s159
      %p165 = scmp.eq.s32.totalorder %s15, 0
      %p166 = por %p164, %p165
      %p167 = scmp.ne.s32.totalorder %s156, %s159
      %p168 = scmp.eq.s32.totalorder %s20, 1
      %p169 = por %p167, %p168
      %p170 = scmp.ne.s32.totalorder %s159, %s160
      %p171 = scmp.eq.s32.totalorder %s20, 0
      %p172 = por %p170, %p171
      %p173 = scmp.ne.s32.totalorder %s159, %s160
      %p174 = scmp.eq.s32.totalorder %s21, 1
      %p175 = por %p173, %p174
      %p177 = scmp.ne.s32.totalorder %s160, %s176
      %p178 = scmp.eq.s32.totalorder %s21, 0
      %p179 = por %p177, %p178
      %p180 = scmp.le.s32.totalorder 1, %s15
      %p181 = scmp.lt.s32.totalorder %s15, 3
      %p182 = pnand %p180, %p181
      %p183 = pneg %p182
      // Predicated region
      $region9: #{tpu_custom_call.1} parent=5 // pred_check
        _
      $region10: #{tpu_custom_call.1} parent=5 // pred_check_branch
        %185 = sbr.rel (%p182) target = $region12
      $region11: #{tpu_custom_call.1} parent=5 // pred_region
        %s186 = ssub.s32 %s15, 1
        // Predicated region
        $region13: #{tpu_custom_call.1} parent=11 // pred_check
          %p187 = pneg %p62
        $region14: #{tpu_custom_call.1} parent=11 // pred_check_branch
          %189 = sbr.rel (%p187) target = $region16
        $region15: #{tpu_custom_call.1} parent=11 // pred_region
          _
        $region16: #{tpu_custom_call.1} parent=11 // pred_fallthru
          _
        // Predicated region
        $region17: #{tpu_custom_call.1} parent=11 // pred_check
          %p190 = pneg %p83
        $region18: #{tpu_custom_call.1} parent=11 // pred_check_branch
          %192 = sbr.rel (%p190) target = $region20
        $region19: #{tpu_custom_call.1} parent=11 // pred_region
          _
        $region20: #{tpu_custom_call.1} parent=11 // pred_fallthru
          _
        // Predicated region
        $region21: #{tpu_custom_call.1} parent=11 // pred_check
          %p193 = pneg %p104
        $region22: #{tpu_custom_call.1} parent=11 // pred_check_branch
          %195 = sbr.rel (%p193) target = $region24
        $region23: #{tpu_custom_call.1} parent=11 // pred_region
          _
        $region24: #{tpu_custom_call.1} parent=11 // pred_fallthru
          _
        // Predicated region
        $region25: #{tpu_custom_call.1} parent=11 // pred_check
          %p196 = pneg %p125
        $region26: #{tpu_custom_call.1} parent=11 // pred_check_branch
          %198 = sbr.rel (%p196) target = $region28
        $region27: #{tpu_custom_call.1} parent=11 // pred_region
          _
        $region28: #{tpu_custom_call.1} parent=11 // pred_fallthru
          _
        // Predicated region
        $region29: #{tpu_custom_call.1} parent=11 // pred_check
          %p199 = pneg %p146
        $region30: #{tpu_custom_call.1} parent=11 // pred_check_branch
          %201 = sbr.rel (%p199) target = $region32
        $region31: #{tpu_custom_call.1} parent=11 // pred_region
          _
        $region32: #{tpu_custom_call.1} parent=11 // pred_fallthru
          _
      $region12: #{tpu_custom_call.1} parent=5 // pred_fallthru
        _
      %p202 = scmp.lt.s32.totalorder %s15, 2
      // Predicated region
      $region33: #{tpu_custom_call.1} parent=5 // pred_check
        %p203 = pneg %p202
      $region34: #{tpu_custom_call.1} parent=5 // pred_check_branch
        %205 = sbr.rel (%p203) target = $region36
      $region35: #{tpu_custom_call.1} parent=5 // pred_region
        // Predicated region
        $region37: #{tpu_custom_call.1} parent=35 // pred_check
          %p206 = pneg %p35
        $region38: #{tpu_custom_call.1} parent=35 // pred_check_branch
          %208 = sbr.rel (%p206) target = $region40
        $region39: #{tpu_custom_call.1} parent=35 // pred_region
          %p209 = scmp.lt.s32.totalorder %s15, 1
          %s210 = scalar_select %p209, %s15, 1
          %s211 = smul.addr %s210, 8
          %s212 = scalar_lea.vmem %s0, %s211
        $region40: #{tpu_custom_call.1} parent=35 // pred_fallthru
          _
      $region36: #{tpu_custom_call.1} parent=5 // pred_fallthru
        _
      %p213 = scmp.le.s32.totalorder 1, %s15
      %p214 = scmp.lt.s32.totalorder %s15, 3
      %p215 = pnand %p213, %p214
      %p216 = pneg %p215
      // Predicated region
      $region41: #{tpu_custom_call.1} parent=5 // pred_check
        _
      $region42: #{tpu_custom_call.1} parent=5 // pred_check_branch
        %218 = sbr.rel (%p215) target = $region44
      $region43: #{tpu_custom_call.1} parent=5 // pred_region
        %s219 = ssub.s32 %s15, 1
        %p220 = scmp.lt.s32.totalorder %s20, 1
        %s221 = scalar_select %p220, %s20, 1
        %s222 = smul.addr %s221, 8
        %s223 = scalar_lea.vmem %s0, %s222
        %p224 = pneg %p41
        %p225 = pneg %p38
        %p226 = pneg %p62
        %p227 = pneg %p59
        %p228 = pneg %p83
        %p229 = pneg %p80
        %p230 = pneg %p104
        %p231 = pneg %p101
        %p232 = pneg %p125
        %p233 = pneg %p122
        %p234 = pneg %p146
        %p235 = pneg %p143
        %p236 = pneg %p172
        %p237 = pneg %p169
        %s238 = sand.u32 %s159, 1
        %s239 = scalar_lea.sflag [#allocation3], %s238
        %s240 = sand.u32 %s159, 1
        %s241 = smul.addr %s240, 8
        %s242 = scalar_lea.vmem [#allocation2], %s241
        %p243 = scmp.lt.s32.totalorder %s20, 1
        %s244 = scalar_select %p243, %s20, 1
        %s245 = smul.addr %s244, 8
        %s246 = scalar_lea.vmem %s0, %s245
        %v247 = vld [vmem:[%s246] sm:$0xff]
        %v248 = vld [vmem:[%s1] sm:$0xff]
        %v249 = vld [vmem:[%s1 + $0x8] sm:$0xff]
        %v250 = vld [vmem:[%s1 + $0x10] sm:$0xff]
        %v251 = vld [vmem:[%s1 + $0x18] sm:$0xff]
        %v252 = vld [vmem:[%s1 + $0x20] sm:$0xff]
        %v253 = vld [vmem:[%s1 + $0x28] sm:$0xff]
        %v254 = vld [vmem:[%s1 + $0x30] sm:$0xff]
        %v255 = vld [vmem:[%s1 + $0x38] sm:$0xff]
        %v256 = vld [vmem:[%s1 + $0x40] sm:$0xff]
        %v257 = vld [vmem:[%s1 + $0x48] sm:$0xff]
        %v258 = vld [vmem:[%s1 + $0x50] sm:$0xff]
        %v259 = vld [vmem:[%s1 + $0x58] sm:$0xff]
        %v260 = vld [vmem:[%s1 + $0x60] sm:$0xff]
        %v261 = vld [vmem:[%s1 + $0x68] sm:$0xff]
        %v262 = vld [vmem:[%s1 + $0x70] sm:$0xff]
        %v263 = vld [vmem:[%s1 + $0x78] sm:$0xff]
        %v264 = vld [vmem:[%s1 + $0x80] sm:$0xff]
        %v265 = vld [vmem:[%s1 + $0x88] sm:$0xff]
        %v266 = vld [vmem:[%s1 + $0x90] sm:$0xff]
        %v267 = vld [vmem:[%s1 + $0x98] sm:$0xff]
        %v268 = vld [vmem:[%s1 + $0xa0] sm:$0xff]
        %v269 = vld [vmem:[%s1 + $0xa8] sm:$0xff]
        %v270 = vld [vmem:[%s1 + $0xb0] sm:$0xff]
        %v271 = vld [vmem:[%s1 + $0xb8] sm:$0xff]
        %v272 = vld [vmem:[%s1 + $0xc0] sm:$0xff]
        %v273 = vld [vmem:[%s1 + $0xc8] sm:$0xff]
        %v274 = vld [vmem:[%s1 + $0xd0] sm:$0xff]
        %v275 = vld [vmem:[%s1 + $0xd8] sm:$0xff]
        %v276 = vld [vmem:[%s1 + $0xe0] sm:$0xff]
        %v277 = vld [vmem:[%s1 + $0xe8] sm:$0xff]
        %v278 = vld [vmem:[%s1 + $0xf0] sm:$0xff]
        %v279 = vld [vmem:[%s1 + $0xf8] sm:$0xff]
        %vm280 = vcmask 261120
        %v282 = vsel %vm280, %v247, 0
        %284 = vmatpush.msra.mxu0 0.0
        %285 = vmatpush.msra.mxu0 0.0
        %286 = vmatpush.msra.mxu0 0.0
        %287 = vmatpush.msra.mxu0 0.0
        %288 = vmatpush.msra.mxu0 0.0
        %289 = vmatpush.msra.mxu0 0.0
        %290 = vmatpush.msra.mxu0 0.0
        %291 = vmatpush.msra.mxu0 0.0
        %292 = vmatpush.msra.mxu0 0.0
        %293 = vmatpush.msra.mxu0 0.0
        %294 = vmatpush.msra.mxu0 0.0
        %295 = vmatpush.msra.mxu0 0.0
        %296 = vmatpush.msra.mxu0 %v251
        %297 = vmatpush.msra.mxu0 %v250
        %298 = vmatpush.msra.mxu0 %v249
        %299 = vmatpush.msra.mxu0 %v248
        %300 = vmatmul.f32.gmra.mxu0 %v282
        %v301 = vpop.f32.mrf.mxu0
        %v302 = vadd.f32 0.0, %v301
        %303 = vdwg.mxu0
        %304 = vmatpush.msra.mxu0 0.0
        %305 = vmatpush.msra.mxu0 0.0
        %306 = vmatpush.msra.mxu0 0.0
        %307 = vmatpush.msra.mxu0 0.0
        %308 = vmatpush.msra.mxu0 0.0
        %309 = vmatpush.msra.mxu0 0.0
        %310 = vmatpush.msra.mxu0 0.0
        %311 = vmatpush.msra.mxu0 0.0
        %312 = vmatpush.msra.mxu0 0.0
        %313 = vmatpush.msra.mxu0 0.0
        %314 = vmatpush.msra.mxu0 0.0
        %315 = vmatpush.msra.mxu0 0.0
        %316 = vmatpush.msra.mxu0 %v255
        %317 = vmatpush.msra.mxu0 %v254
        %318 = vmatpush.msra.mxu0 %v253
        %319 = vmatpush.msra.mxu0 %v252
        %320 = vmatmul.f32.gmra.mxu0 %v282
        %v321 = vpop.f32.mrf.mxu0
        %v322 = vadd.f32 0.0, %v321
        %323 = vdwg.mxu0
        %324 = vmatpush.msra.mxu0 0.0
        %325 = vmatpush.msra.mxu0 0.0
        %326 = vmatpush.msra.mxu0 0.0
        %327 = vmatpush.msra.mxu0 0.0
        %328 = vmatpush.msra.mxu0 0.0
        %329 = vmatpush.msra.mxu0 0.0
        %330 = vmatpush.msra.mxu0 0.0
        %331 = vmatpush.msra.mxu0 0.0
        %332 = vmatpush.msra.mxu0 0.0
        %333 = vmatpush.msra.mxu0 0.0
        %334 = vmatpush.msra.mxu0 0.0
        %335 = vmatpush.msra.mxu0 0.0
        %336 = vmatpush.msra.mxu0 %v259
        %337 = vmatpush.msra.mxu0 %v258
        %338 = vmatpush.msra.mxu0 %v257
        %339 = vmatpush.msra.mxu0 %v256
        %340 = vmatmul.f32.gmra.mxu0 %v282
        %v341 = vpop.f32.mrf.mxu0
        %v342 = vadd.f32 0.0, %v341
        %343 = vdwg.mxu0
        %344 = vmatpush.msra.mxu0 0.0
        %345 = vmatpush.msra.mxu0 0.0
        %346 = vmatpush.msra.mxu0 0.0
        %347 = vmatpush.msra.mxu0 0.0
        %348 = vmatpush.msra.mxu0 0.0
        %349 = vmatpush.msra.mxu0 0.0
        %350 = vmatpush.msra.mxu0 0.0
        %351 = vmatpush.msra.mxu0 0.0
        %352 = vmatpush.msra.mxu0 0.0
        %353 = vmatpush.msra.mxu0 0.0
        %354 = vmatpush.msra.mxu0 0.0
        %355 = vmatpush.msra.mxu0 0.0
        %356 = vmatpush.msra.mxu0 %v263
        %357 = vmatpush.msra.mxu0 %v262
        %358 = vmatpush.msra.mxu0 %v261
        %359 = vmatpush.msra.mxu0 %v260
        %360 = vmatmul.f32.gmra.mxu0 %v282
        %v361 = vpop.f32.mrf.mxu0
        %v362 = vadd.f32 0.0, %v361
        %363 = vdwg.mxu0
        %364 = vmatpush.msra.mxu0 0.0
        %365 = vmatpush.msra.mxu0 0.0
        %366 = vmatpush.msra.mxu0 0.0
        %367 = vmatpush.msra.mxu0 0.0
        %368 = vmatpush.msra.mxu0 0.0
        %369 = vmatpush.msra.mxu0 0.0
        %370 = vmatpush.msra.mxu0 0.0
        %371 = vmatpush.msra.mxu0 0.0
        %372 = vmatpush.msra.mxu0 0.0
        %373 = vmatpush.msra.mxu0 0.0
        %374 = vmatpush.msra.mxu0 0.0
        %375 = vmatpush.msra.mxu0 0.0
        %376 = vmatpush.msra.mxu0 %v267
        %377 = vmatpush.msra.mxu0 %v266
        %378 = vmatpush.msra.mxu0 %v265
        %379 = vmatpush.msra.mxu0 %v264
        %380 = vmatmul.f32.gmra.mxu0 %v282
        %v381 = vpop.f32.mrf.mxu0
        %v382 = vadd.f32 0.0, %v381
        %383 = vdwg.mxu0
        %384 = vmatpush.msra.mxu0 0.0
        %385 = vmatpush.msra.mxu0 0.0
        %386 = vmatpush.msra.mxu0 0.0
        %387 = vmatpush.msra.mxu0 0.0
        %388 = vmatpush.msra.mxu0 0.0
        %389 = vmatpush.msra.mxu0 0.0
        %390 = vmatpush.msra.mxu0 0.0
        %391 = vmatpush.msra.mxu0 0.0
        %392 = vmatpush.msra.mxu0 0.0
        %393 = vmatpush.msra.mxu0 0.0
        %394 = vmatpush.msra.mxu0 0.0
        %395 = vmatpush.msra.mxu0 0.0
        %396 = vmatpush.msra.mxu0 %v271
        %397 = vmatpush.msra.mxu0 %v270
        %398 = vmatpush.msra.mxu0 %v269
        %399 = vmatpush.msra.mxu0 %v268
        %400 = vmatmul.f32.gmra.mxu0 %v282
        %v401 = vpop.f32.mrf.mxu0
        %v402 = vadd.f32 0.0, %v401
        %403 = vdwg.mxu0
        %404 = vmatpush.msra.mxu0 0.0
        %405 = vmatpush.msra.mxu0 0.0
        %406 = vmatpush.msra.mxu0 0.0
        %407 = vmatpush.msra.mxu0 0.0
        %408 = vmatpush.msra.mxu0 0.0
        %409 = vmatpush.msra.mxu0 0.0
        %410 = vmatpush.msra.mxu0 0.0
        %411 = vmatpush.msra.mxu0 0.0
        %412 = vmatpush.msra.mxu0 0.0
        %413 = vmatpush.msra.mxu0 0.0
        %414 = vmatpush.msra.mxu0 0.0
        %415 = vmatpush.msra.mxu0 0.0
        %416 = vmatpush.msra.mxu0 %v275
        %417 = vmatpush.msra.mxu0 %v274
        %418 = vmatpush.msra.mxu0 %v273
        %419 = vmatpush.msra.mxu0 %v272
        %420 = vmatmul.f32.gmra.mxu0 %v282
        %v421 = vpop.f32.mrf.mxu0
        %v422 = vadd.f32 0.0, %v421
        %423 = vdwg.mxu0
        %424 = vmatpush.msra.mxu0 0.0
        %425 = vmatpush.msra.mxu0 0.0
        %426 = vmatpush.msra.mxu0 0.0
        %427 = vmatpush.msra.mxu0 0.0
        %428 = vmatpush.msra.mxu0 0.0
        %429 = vmatpush.msra.mxu0 0.0
        %430 = vmatpush.msra.mxu0 0.0
        %431 = vmatpush.msra.mxu0 0.0
        %432 = vmatpush.msra.mxu0 0.0
        %433 = vmatpush.msra.mxu0 0.0
        %434 = vmatpush.msra.mxu0 0.0
        %435 = vmatpush.msra.mxu0 0.0
        %436 = vmatpush.msra.mxu0 %v279
        %437 = vmatpush.msra.mxu0 %v278
        %438 = vmatpush.msra.mxu0 %v277
        %439 = vmatpush.msra.mxu0 %v276
        %440 = vmatmul.f32.gmra.mxu0 %v282
        %v441 = vpop.f32.mrf.mxu0
        %v442 = vadd.f32 0.0, %v441
        %443 = vdwg.mxu0
        %v444 = vld [vmem:[%s5] sm:$0xff]
        %vm445 = vcmask 64512
        %v447 = vsel %vm445, %v302, 0
        %v450 = vsel %vm445, %v322, 0
        %v453 = vsel %vm445, %v342, 0
        %v456 = vsel %vm445, %v362, 0
        %v459 = vsel %vm445, %v382, 0
        %v462 = vsel %vm445, %v402, 0
        %464 = vmatpush.msra.mxu0 0.0
        %465 = vmatpush.msra.mxu0 0.0
        %466 = vmatpush.msra.mxu0 0.0
        %467 = vmatpush.msra.mxu0 0.0
        %468 = vmatpush.msra.mxu0 0.0
        %469 = vmatpush.msra.mxu0 0.0
        %470 = vmatpush.msra.mxu0 0.0
        %471 = vmatpush.msra.mxu0 0.0
        %472 = vmatpush.msra.mxu0 0.0
        %473 = vmatpush.msra.mxu0 0.0
        %474 = vmatpush.msra.mxu0 0.0
        %475 = vmatpush.msra.mxu0 0.0
        %476 = vmatpush.msra.mxu0 0.0
        %477 = vmatpush.msra.mxu0 0.0
        %478 = vmatpush.msra.mxu0 0.0
        %479 = vmatpush.msra.mxu0 %v444
        %480 = vmatmul.f32.gmra.mxu0 %v447
        %v481 = vpop.f32.mrf.mxu0
        %v482 = vadd.f32 0.0, %v481
        %483 = vmatmul.f32.gmra.mxu0 %v450
        %v484 = vpop.f32.mrf.mxu0
        %v485 = vadd.f32 0.0, %v484
        %486 = vmatmul.f32.gmra.mxu0 %v453
        %v487 = vpop.f32.mrf.mxu0
        %v488 = vadd.f32 0.0, %v487
        %489 = vmatmul.f32.gmra.mxu0 %v456
        %v490 = vpop.f32.mrf.mxu0
        %v491 = vadd.f32 0.0, %v490
        %492 = vmatmul.f32.gmra.mxu0 %v459
        %v493 = vpop.f32.mrf.mxu0
        %v494 = vadd.f32 0.0, %v493
        %495 = vmatmul.f32.gmra.mxu0 %v462
        %v496 = vpop.f32.mrf.mxu0
        %v497 = vadd.f32 0.0, %v496
        %498 = vdwg.mxu0
        %v499 = vld [vmem:[%s3] sm:$0xff]
        %v500 = vld [vmem:[%s4] sm:$0xff]
        %v501 = vmul.f32 %v302, %v499
        %v502 = vmul.f32 %v322, %v499
        %v503 = vmul.f32 %v342, %v499
        %v504 = vmul.f32 %v362, %v499
        %v505 = vmul.f32 %v382, %v499
        %v506 = vmul.f32 %v402, %v499
        %v507 = vmul.f32 %v482, %v500
        %v508 = vmul.f32 %v485, %v500
        %v509 = vmul.f32 %v488, %v500
        %v510 = vmul.f32 %v491, %v500
        %v511 = vmul.f32 %v494, %v500
        %v512 = vmul.f32 %v497, %v500
        %v513 = vadd.f32 %v501, %v507
        %v514 = vadd.f32 %v502, %v508
        %v515 = vadd.f32 %v503, %v509
        %v516 = vadd.f32 %v504, %v510
        %v517 = vadd.f32 %v505, %v511
        %v518 = vadd.f32 %v506, %v512
        %v520 = vsel %vm445, %v513, 0
        %v523 = vsel %vm445, %v514, 0
        %v526 = vsel %vm445, %v517, 0
        %528 = vmatpush.xpose.msra.mxu0 0.0
        %529 = vmatpush.xpose.msra.mxu0 0.0
        %530 = vmatpush.xpose.msra.mxu0 0.0
        %531 = vmatpush.xpose.msra.mxu0 0.0
        %532 = vmatpush.xpose.msra.mxu0 0.0
        %533 = vmatpush.xpose.msra.mxu0 0.0
        %534 = vmatpush.xpose.msra.mxu0 0.0
        %535 = vmatpush.xpose.msra.mxu0 0.0
        %536 = vmatpush.xpose.msra.mxu0 0.0
        %537 = vmatpush.xpose.msra.mxu0 0.0
        %538 = vmatpush.xpose.msra.mxu0 0.0
        %539 = vmatpush.xpose.msra.mxu0 0.0
        %540 = vmatpush.xpose.msra.mxu0 0.0
        %541 = vmatpush.xpose.msra.mxu0 0.0
        %542 = vmatpush.xpose.msra.mxu0 0.0
        %543 = vmatpush.xpose.msra.mxu0 %v526
        %544 = vmatmul.f32.gmra.mxu0 %v520
        %v545 = vpop.f32.mrf.mxu0
        %v546 = vadd.f32 0.0, %v545
        %547 = vmatmul.f32.gmra.mxu0 %v523
        %v548 = vpop.f32.mrf.mxu0
        %v549 = vadd.f32 0.0, %v548
        %550 = vdwg.mxu0
        %v552 = vsel %vm445, %v515, 0
        %v555 = vsel %vm445, %v516, 0
        %v558 = vsel %vm445, %v518, 0
        %560 = vmatpush.xpose.msra.mxu0 0.0
        %561 = vmatpush.xpose.msra.mxu0 0.0
        %562 = vmatpush.xpose.msra.mxu0 0.0
        %563 = vmatpush.xpose.msra.mxu0 0.0
        %564 = vmatpush.xpose.msra.mxu0 0.0
        %565 = vmatpush.xpose.msra.mxu0 0.0
        %566 = vmatpush.xpose.msra.mxu0 0.0
        %567 = vmatpush.xpose.msra.mxu0 0.0
        %568 = vmatpush.xpose.msra.mxu0 0.0
        %569 = vmatpush.xpose.msra.mxu0 0.0
        %570 = vmatpush.xpose.msra.mxu0 0.0
        %571 = vmatpush.xpose.msra.mxu0 0.0
        %572 = vmatpush.xpose.msra.mxu0 0.0
        %573 = vmatpush.xpose.msra.mxu0 0.0
        %574 = vmatpush.xpose.msra.mxu0 0.0
        %575 = vmatpush.xpose.msra.mxu0 %v558
        %576 = vmatmul.f32.gmra.mxu0 %v552
        %v577 = vpop.f32.mrf.mxu0
        %v578 = vadd.f32 0.0, %v577
        %579 = vmatmul.f32.gmra.mxu0 %v555
        %v580 = vpop.f32.mrf.mxu0
        %v581 = vadd.f32 0.0, %v580
        %582 = vdwg.mxu0
        %v583 = vmul.f32 %v546, 0.35355338
        %v584 = vmul.f32 %v549, 0.35355338
        %v585 = vmul.f32 %v578, 0.35355338
        %v586 = vmul.f32 %v581, 0.35355338
        %v587 = vlaneseq
        %v588 = vshrl.u32 %v587, 7
        %v589 = vlaneseq
        %v590 = vand.u32 %v589, 127
        %vm591 = vcmp.le.s32.totalorder %v590, %v588
        %v592 = vsel %vm591, 1, 0
        %vm593 = vcmp.eq.s32.totalorder %v592, 1
        %v594 = vsel %vm593, %v583, -1e+30
        %v595 = vsel %vm593, %v584, -1e+30
        %v596 = vsel %vm593, %v585, -1e+30
        %v597 = vsel %vm593, %v586, -1e+30
        %v598 = vsel %vm445, %v594, -inf
        %599 = vmax.xlane.f32.xlu0 %v598
        %v600 = vpop.xlane.xlu0 %599
        %v601 = vsel %vm445, %v595, -inf
        %602 = vmax.xlane.f32.xlu0 %v601
        %v603 = vpop.xlane.xlu0 %602
        %v604 = vsel %vm445, %v596, -inf
        %605 = vmax.xlane.f32.xlu0 %v604
        %v606 = vpop.xlane.xlu0 %605
        %v607 = vsel %vm445, %v597, -inf
        %608 = vmax.xlane.f32.xlu0 %v607
        %v609 = vpop.xlane.xlu0 %608
        %v610 = vsub.f32 %v594, %v600
        %v611 = vsub.f32 %v595, %v603
        %v612 = vsub.f32 %v596, %v606
        %v613 = vsub.f32 %v597, %v609
        %v614 = vmul.f32 %v610, 1.442695
        %v615 = vpow.pop %v614
        %v616 = vmul.f32 %v611, 1.442695
        %v617 = vpow.pop %v616
        %v618 = vmul.f32 %v612, 1.442695
        %v619 = vpow.pop %v618
        %v620 = vmul.f32 %v613, 1.442695
        %v621 = vpow.pop %v620
        %v622 = vsel %vm445, %v615, 0.0
        %623 = vadd.xlane.f32.xlu0 %v622
        %v624 = vpop.xlane.xlu0 %623
        %v625 = vsel %vm445, %v617, 0.0
        %626 = vadd.xlane.f32.xlu0 %v625
        %v627 = vpop.xlane.xlu0 %626
        %v628 = vsel %vm445, %v619, 0.0
        %629 = vadd.xlane.f32.xlu0 %v628
        %v630 = vpop.xlane.xlu0 %629
        %v631 = vsel %vm445, %v621, 0.0
        %632 = vadd.xlane.f32.xlu0 %v631
        %v633 = vpop.xlane.xlu0 %632
        %v634 = vrcp.pop %v624
        %v635 = vrcp.pop %v627
        %v636 = vrcp.pop %v630
        %v637 = vrcp.pop %v633
        %v638 = vmul.f32 %v615, %v634
        %v639 = vmul.f32 %v617, %v635
        %v640 = vmul.f32 %v619, %v636
        %v641 = vmul.f32 %v621, %v637
        %v643 = vsel %vm445, %v638, 0
        %v646 = vsel %vm445, %v639, 0
        %648 = vmatpush.msra.mxu0 0.0
        %649 = vmatpush.msra.mxu0 0.0
        %650 = vmatpush.msra.mxu0 0.0
        %651 = vmatpush.msra.mxu0 0.0
        %652 = vmatpush.msra.mxu0 0.0
        %653 = vmatpush.msra.mxu0 0.0
        %654 = vmatpush.msra.mxu0 0.0
        %655 = vmatpush.msra.mxu0 0.0
        %656 = vmatpush.msra.mxu0 0.0
        %657 = vmatpush.msra.mxu0 0.0
        %658 = vmatpush.msra.mxu0 0.0
        %659 = vmatpush.msra.mxu0 0.0
        %660 = vmatpush.msra.mxu0 0.0
        %661 = vmatpush.msra.mxu0 0.0
        %662 = vmatpush.msra.mxu0 0.0
        %663 = vmatpush.msra.mxu0 %v422
        %664 = vmatmul.f32.gmra.mxu0 %v643
        %v665 = vpop.f32.mrf.mxu0
        %v666 = vadd.f32 0.0, %v665
        %667 = vmatmul.f32.gmra.mxu0 %v646
        %v668 = vpop.f32.mrf.mxu0
        %v669 = vadd.f32 0.0, %v668
        %670 = vdwg.mxu0
        %v672 = vsel %vm445, %v640, 0
        %v675 = vsel %vm445, %v641, 0
        %677 = vmatpush.msra.mxu0 0.0
        %678 = vmatpush.msra.mxu0 0.0
        %679 = vmatpush.msra.mxu0 0.0
        %680 = vmatpush.msra.mxu0 0.0
        %681 = vmatpush.msra.mxu0 0.0
        %682 = vmatpush.msra.mxu0 0.0
        %683 = vmatpush.msra.mxu0 0.0
        %684 = vmatpush.msra.mxu0 0.0
        %685 = vmatpush.msra.mxu0 0.0
        %686 = vmatpush.msra.mxu0 0.0
        %687 = vmatpush.msra.mxu0 0.0
        %688 = vmatpush.msra.mxu0 0.0
        %689 = vmatpush.msra.mxu0 0.0
        %690 = vmatpush.msra.mxu0 0.0
        %691 = vmatpush.msra.mxu0 0.0
        %692 = vmatpush.msra.mxu0 %v442
        %693 = vmatmul.f32.gmra.mxu0 %v672
        %v694 = vpop.f32.mrf.mxu0
        %v695 = vadd.f32 0.0, %v694
        %696 = vmatmul.f32.gmra.mxu0 %v675
        %v697 = vpop.f32.mrf.mxu0
        %v698 = vadd.f32 0.0, %v697
        %699 = vdwg.mxu0
        %v700 = vld [vmem:[%s2] sm:$0xff]
        %v701 = vld [vmem:[%s2 + $0x8] sm:$0xff]
        %v702 = vld [vmem:[%s2 + $0x10] sm:$0xff]
        %v703 = vld [vmem:[%s2 + $0x18] sm:$0xff]
        %v705 = vsel %vm445, %v666, 0
        %707 = vmatpush.msra.mxu0 0.0
        %708 = vmatpush.msra.mxu0 0.0
        %709 = vmatpush.msra.mxu0 0.0
        %710 = vmatpush.msra.mxu0 0.0
        %711 = vmatpush.msra.mxu0 0.0
        %712 = vmatpush.msra.mxu0 0.0
        %713 = vmatpush.msra.mxu0 0.0
        %714 = vmatpush.msra.mxu0 0.0
        %715 = vmatpush.msra.mxu0 0.0
        %716 = vmatpush.msra.mxu0 0.0
        %717 = vmatpush.msra.mxu0 0.0
        %718 = vmatpush.msra.mxu0 0.0
        %719 = vmatpush.msra.mxu0 0.0
        %720 = vmatpush.msra.mxu0 0.0
        %721 = vmatpush.msra.mxu0 0.0
        %722 = vmatpush.msra.mxu0 %v700
        %723 = vmatmul.f32.gmra.mxu0 %v705
        %v724 = vpop.f32.mrf.mxu0
        %v725 = vadd.f32 0.0, %v724
        %726 = vdwg.mxu0
        %v728 = vsel %vm445, %v669, 0
        %730 = vmatpush.msra.mxu0 0.0
        %731 = vmatpush.msra.mxu0 0.0
        %732 = vmatpush.msra.mxu0 0.0
        %733 = vmatpush.msra.mxu0 0.0
        %734 = vmatpush.msra.mxu0 0.0
        %735 = vmatpush.msra.mxu0 0.0
        %736 = vmatpush.msra.mxu0 0.0
        %737 = vmatpush.msra.mxu0 0.0
        %738 = vmatpush.msra.mxu0 0.0
        %739 = vmatpush.msra.mxu0 0.0
        %740 = vmatpush.msra.mxu0 0.0
        %741 = vmatpush.msra.mxu0 0.0
        %742 = vmatpush.msra.mxu0 0.0
        %743 = vmatpush.msra.mxu0 0.0
        %744 = vmatpush.msra.mxu0 0.0
        %745 = vmatpush.msra.mxu0 %v701
        %746 = vmatmul.f32.gmra.mxu0 %v728
        %v747 = vpop.f32.mrf.mxu0
        %v748 = vadd.f32 0.0, %v747
        %749 = vdwg.mxu0
        %v751 = vsel %vm445, %v695, 0
        %753 = vmatpush.msra.mxu0 0.0
        %754 = vmatpush.msra.mxu0 0.0
        %755 = vmatpush.msra.mxu0 0.0
        %756 = vmatpush.msra.mxu0 0.0
        %757 = vmatpush.msra.mxu0 0.0
        %758 = vmatpush.msra.mxu0 0.0
        %759 = vmatpush.msra.mxu0 0.0
        %760 = vmatpush.msra.mxu0 0.0
        %761 = vmatpush.msra.mxu0 0.0
        %762 = vmatpush.msra.mxu0 0.0
        %763 = vmatpush.msra.mxu0 0.0
        %764 = vmatpush.msra.mxu0 0.0
        %765 = vmatpush.msra.mxu0 0.0
        %766 = vmatpush.msra.mxu0 0.0
        %767 = vmatpush.msra.mxu0 0.0
        %768 = vmatpush.msra.mxu0 %v702
        %769 = vmatmul.f32.gmra.mxu0 %v751
        %v770 = vpop.f32.mrf.mxu0
        %v771 = vadd.f32 0.0, %v770
        %772 = vdwg.mxu0
        %v774 = vsel %vm445, %v698, 0
        %776 = vmatpush.msra.mxu0 0.0
        %777 = vmatpush.msra.mxu0 0.0
        %778 = vmatpush.msra.mxu0 0.0
        %779 = vmatpush.msra.mxu0 0.0
        %780 = vmatpush.msra.mxu0 0.0
        %781 = vmatpush.msra.mxu0 0.0
        %782 = vmatpush.msra.mxu0 0.0
        %783 = vmatpush.msra.mxu0 0.0
        %784 = vmatpush.msra.mxu0 0.0
        %785 = vmatpush.msra.mxu0 0.0
        %786 = vmatpush.msra.mxu0 0.0
        %787 = vmatpush.msra.mxu0 0.0
        %788 = vmatpush.msra.mxu0 0.0
        %789 = vmatpush.msra.mxu0 0.0
        %790 = vmatpush.msra.mxu0 0.0
        %791 = vmatpush.msra.mxu0 %v703
        %792 = vmatmul.f32.gmra.mxu0 %v774
        %v793 = vpop.f32.mrf.mxu0
        %v794 = vadd.f32 0.0, %v793
        %795 = vdwg.mxu0
        %v796 = vsel %vm280, %v725, 0.0
        %v797 = vsel %vm280, %v748, 0.0
        %v798 = vadd.f32 %v796, %v797
        %v799 = vsel %vm280, %v771, 0.0
        %v800 = vadd.f32 %v798, %v799
        %v801 = vsel %vm280, %v794, 0.0
        %v802 = vadd.f32 %v800, %v801
        %803 = vst.msk [vmem:[%s242] sm:$0xff] %vm280, %v802
        %s804 = sand.u32 %s159, 1
        %s805 = scalar_lea.sflag [#allocation3], %s804
        %s806 = sand.u32 %s159, 1
        %s807 = smul.addr %s806, 8
        %s808 = scalar_lea.vmem [#allocation2], %s807
        // Predicated region
        $region45: #{tpu_custom_call.1} parent=43 // pred_check
          %p809 = pneg %p169
        $region46: #{tpu_custom_call.1} parent=43 // pred_check_branch
          %811 = sbr.rel (%p809) target = $region48
        $region47: #{tpu_custom_call.1} parent=43 // pred_region
          %813 = vsyncadd %s805, 0
          %s814 = smul.addr %s20, 8
          %s815 = scalar_lea.hbm %s6, %s814
          %s817 = sshll.u32 %s808, 4
          %s818 = int_to_ptr.vmem [resolvable:$true] %s817
          %s819 = sshll.u32 %s815, 4
          %s820 = int_to_ptr.hbm [resolvable:$true] %s819
          %822 = dma.vmem_to_hbm [thread:$0]  %s818, 128, %s820, %s805
        $region48: #{tpu_custom_call.1} parent=43 // pred_fallthru
          _
      $region44: #{tpu_custom_call.1} parent=5 // pred_fallthru
        _
      %p823 = scmp.le.s32.totalorder 2, %s15
      // Predicated region
      $region49: #{tpu_custom_call.1} parent=5 // pred_check
        %p824 = pneg %p823
      $region50: #{tpu_custom_call.1} parent=5 // pred_check_branch
        %826 = sbr.rel (%p824) target = $region52
      $region51: #{tpu_custom_call.1} parent=5 // pred_region
        %s827 = ssub.s32 %s15, 2
        // Predicated region
        $region53: #{tpu_custom_call.1} parent=51 // pred_check
          %p828 = pneg %p175
        $region54: #{tpu_custom_call.1} parent=51 // pred_check_branch
          %830 = sbr.rel (%p828) target = $region56
        $region55: #{tpu_custom_call.1} parent=51 // pred_region
          %s831 = sand.u32 %s160, 1
          %s832 = scalar_lea.sflag [#allocation3], %s831
          %s833 = sand.u32 %s160, 1
          %s834 = smul.addr %s833, 8
          %s835 = scalar_lea.vmem [#allocation2], %s834
          %837 = dma.done %s832, 128
        $region56: #{tpu_custom_call.1} parent=51 // pred_fallthru
          _
      $region52: #{tpu_custom_call.1} parent=5 // pred_fallthru
        _
    $region6: #{tpu_custom_call.1} parent=1 // loop_footer
      %s19 = sadd.s32 1, %s15
    $region7: #{tpu_custom_call.1} parent=1 // loop_footer_branch
      %14 = sbr.rel target = $region3
    $region8: #{tpu_custom_call.1} parent=1 // loop_exit
      _
    %838 = vsyncpa [#allocation3], 1
    %s839 = scalar_lea.sflag [#allocation3], 1
    %840 = vsyncpa %s839, 1

</llo_original>
